<compile_context>
chip_gen: v5e
topology: v5e:2x2
jax: 0.10.0
libtpu: 0.0.40
codegen_flags: <defaults>
</compile_context>

<pallas_src>
import numpy as np
import jax
import jax.numpy as jnp
from jax import lax
from jax.experimental import pallas as pl
from jax.experimental.pallas import tpu as pltpu


def clip_lse_kernel(scale_ref, a_ref, tt_ref, row_lse_ref, col_part_ref):
    """One (TM, TN) tile of the logits matrix.

    a_ref:  (TM, Dp) bf16, L2-normalized audio rows with exp(logit_scale)
            already folded in.
    tt_ref: (Dp, TN) bf16, L2-normalized text features, pre-transposed.
    row_lse_ref:  (TM, 1) f32 output block, resident across the j sweep;
                  used directly as the row sum-exp accumulator, converted to
                  LSE on the last j step.
    col_part_ref: (1, 1, TN) f32 per-tile partial column sum-exp (combined
                  across row blocks in the wrapper).
    """
    j = pl.program_id(1)
    nj = pl.num_programs(1)
    scale = scale_ref[0, 0]

    # Single bf16 MXU matmul per tile, f32 accumulation, no operand transpose.
    logits = jnp.dot(a_ref[...], tt_ref[...],
                     preferred_element_type=jnp.float32)          # (TM, TN)

    # Static max shift (|logit| <= scale): one exp pass, reused for both sums.
    p = jnp.exp(logits - scale)                                   # (TM, TN)

    @pl.when(j == 0)
    def _():
        row_lse_ref[...] = jnp.zeros_like(row_lse_ref)

    row_lse_ref[...] += jnp.sum(p, axis=-1, keepdims=True)        # (TM, 1)
    col_part_ref[0] = jnp.sum(p, axis=0, keepdims=True)           # (1, TN)

    @pl.when(j == nj - 1)
    def _():
        row_lse_ref[...] = scale + jnp.log(row_lse_ref[...])


def _pick_row_tile(n):
    for t in (2048, 1024, 512, 256, 128):
        if n % t == 0:
            return t
    return n  # awkward / tiny batch: single row block


def _pick_col_tile(n):
    for t in (256, 128):
        if n % t == 0:
            return t
    return n  # tiny batch: single column block


def clip_loss_1d(audio_features, text_features, logit_scale,
                 *, block_rows=None, block_cols=None):
    """audio_features, text_features: (B, D) float32; logit_scale: scalar."""
    B, D = audio_features.shape
    assert text_features.shape == (B, D)

    scale = jnp.exp(jnp.asarray(logit_scale, dtype=jnp.float32))

    # ---- prologue (plain XLA): pad, normalize, fold scale, cast, transpose --
    d_pad = max(128, ((D + 127) // 128) * 128)
    a = audio_features.astype(jnp.float32)
    t = text_features.astype(jnp.float32)
    if d_pad != D:
        pad = [(0, 0), (0, d_pad - D)]
        a = jnp.pad(a, pad)
        t = jnp.pad(t, pad)
    a_n = a * (lax.rsqrt(jnp.sum(a * a, axis=-1, keepdims=True)) * scale)
    t_n = t * lax.rsqrt(jnp.sum(t * t, axis=-1, keepdims=True))
    a_bf = a_n.astype(jnp.bfloat16)                 # (B, Dp)  scale folded in
    t_bf = t_n.astype(jnp.bfloat16)                 # (B, Dp)
    # True-class logits from the same bf16-rounded operands the MXU sees.
    diag = jnp.sum(a_bf.astype(jnp.float32) * t_bf.astype(jnp.float32),
                   axis=-1)                         # (B,)
    t_t = t_bf.T                                    # (Dp, B), pre-transposed

    # ---- tiling --------------------------------------------------------------
    tm = block_rows if block_rows is not None else _pick_row_tile(B)
    tn = block_cols if block_cols is not None else _pick_col_tile(B)
    assert B % tm == 0 and B % tn == 0
    assert tm == B or tm % 8 == 0
    assert tn == B or tn % 128 == 0
    ni, nj = B // tm, B // tn

    # ---- VMEM budget (matters on v7x: 64 MiB physical / 32 MiB scoped) ------
    vmem_need = (2 * tm * d_pad * 2          # audio bf16, double buffered
                 + 2 * d_pad * tn * 2        # text bf16, double buffered
                 + 4 * tm * tn * 4           # logits / exp intermediates
                 + 2 * tm * 4 + 2 * tn * 4)  # outputs
    vmem_limit = None
    if vmem_need > 24 * 1024 * 1024:
        vmem_limit = min(int(vmem_need * 3 // 2), 64 * 1024 * 1024)

    scale_arr = scale.reshape(1, 1)

    row_lse, col_part = pl.pallas_call(
        clip_lse_kernel,
        out_shape=(
            jax.ShapeDtypeStruct((B, 1), jnp.float32),       # row-wise LSE
            jax.ShapeDtypeStruct((ni, 1, B), jnp.float32),   # col partial sums
        ),
        grid=(ni, nj),
        in_specs=[
            pl.BlockSpec(memory_space=pltpu.SMEM),                 # scale
            pl.BlockSpec((tm, d_pad), lambda i, j: (i, 0)),        # audio rows
            pl.BlockSpec((d_pad, tn), lambda i, j: (0, j)),        # text (K,N)
        ],
        out_specs=(
            pl.BlockSpec((tm, 1), lambda i, j: (i, 0)),
            pl.BlockSpec((1, 1, tn), lambda i, j: (i, 0, j)),
        ),
        compiler_params=pltpu.CompilerParams(
            dimension_semantics=("parallel", "arbitrary"),
            vmem_limit_bytes=vmem_limit),
        cost_estimate=pl.CostEstimate(
            flops=int(2 * B * B * d_pad),
            transcendentals=int(B * B),
            bytes_accessed=int(2 * B * d_pad * (1 + ni) + 4 * B * (1 + ni))),
    )(scale_arr, a_bf, t_t)

    # ---- O(B) epilogue -------------------------------------------------------
    col_lse = scale + jnp.log(jnp.sum(col_part[:, 0, :], axis=0))   # (B,)
    loss_audio = jnp.mean(row_lse[:, 0] - diag)   # CE(logits_per_image)
    loss_text = jnp.mean(col_lse - diag)          # CE(logits_per_text)
    return 0.5 * (loss_audio + loss_text)


def reference_clip_loss(audio, text, logit_scale):
    a = audio / jnp.linalg.norm(audio, axis=-1, keepdims=True)
    t = text / jnp.linalg.norm(text, axis=-1, keepdims=True)
    scale = jnp.exp(logit_scale)
    logits_ai = scale * a @ t.T
    logits_ta = logits_ai.T
    labels = jnp.arange(audio.shape[0])

    def ce(lg):
        logp = jax.nn.log_softmax(lg, axis=-1)
        return -jnp.mean(logp[jnp.arange(lg.shape[0]), labels])

    return (ce(logits_ai) + ce(logits_ta)) / 2.0


if __name__ == "__main__":
    # Deterministic parameter init: nn.Parameter(ones([]) * log(1/0.07)).
    logit_scale = jnp.float32(np.log(1.0 / 0.07))

    key = jax.random.PRNGKey(0)
    ka, kt, kb, kc, kd, ke = jax.random.split(key, 6)

    # Case 1: tiny single-tile shapes (batch=8, feature dim=32).
    audio = jax.random.normal(ka, (8, 32), dtype=jnp.float32)
    text = jax.random.normal(kt, (8, 32), dtype=jnp.float32)
    loss = jax.block_until_ready(clip_loss_1d(audio, text, logit_scale))
    ref = jax.block_until_ready(reference_clip_loss(audio, text, logit_scale))
    np.testing.assert_allclose(np.asarray(loss), np.asarray(ref),
                               rtol=2e-2, atol=2e-2)

    # Case 2: 2x2 grid (exercises row accumulation across j and the
    # cross-row-block column-partial combine).
    audio2 = jax.random.normal(kb, (256, 40), dtype=jnp.float32)
    text2 = jax.random.normal(kc, (256, 40), dtype=jnp.float32)
    loss2 = jax.block_until_ready(
        clip_loss_1d(audio2, text2, logit_scale, block_rows=128, block_cols=128))
    ref2 = jax.block_until_ready(reference_clip_loss(audio2, text2, logit_scale))
    np.testing.assert_allclose(np.asarray(loss2), np.asarray(ref2),
                               rtol=2e-2, atol=2e-2)

    # Case 3: default (asymmetric) tile picker, multi-column-block path.
    audio3 = jax.random.normal(kd, (512, 72), dtype=jnp.float32)
    text3 = jax.random.normal(ke, (512, 72), dtype=jnp.float32)
    loss3 = jax.block_until_ready(clip_loss_1d(audio3, text3, logit_scale))
    ref3 = jax.block_until_ready(reference_clip_loss(audio3, text3, logit_scale))
    np.testing.assert_allclose(np.asarray(loss3), np.asarray(ref3),
                               rtol=2e-2, atol=2e-2)

    print("KERNEL_OK")
</pallas_src>

<mosaic_0001>
module attributes {stable_mosaic.version = 11 : i64} {
  func.func @clip_lse_kernel(%arg0: i32, %arg1: i32, %arg2: memref<1x1xf32, #tpu.memory_space<smem>>, %arg3: memref<8x128xbf16, #tpu.memory_space<vmem>>, %arg4: memref<128x8xbf16, #tpu.memory_space<vmem>>, %arg5: memref<8x1xf32, #tpu.memory_space<vmem>>, %arg6: memref<1x1x8xf32, #tpu.memory_space<vmem>>) attributes {dimension_semantics = [#tpu.dimension_semantics<parallel>, #tpu.dimension_semantics<arbitrary>], iteration_bounds = array<i64: 1, 1>, scalar_prefetch = 0 : i64, scratch_operands = 0 : i64, tpu.core_type = #tpu.core_type<tc>, window_params = [{transform_indices = @transform_0, window_bounds = array<i64: 1, 1>}, {transform_indices = @transform_1, window_bounds = array<i64: 8, 128>}, {transform_indices = @transform_2, window_bounds = array<i64: 128, 8>}, {transform_indices = @transform_3, window_bounds = array<i64: 8, 1>}, {transform_indices = @transform_4, window_bounds = array<i64: 1, 1, 8>}]} {
    %c0 = arith.constant 0 : index
    %c0_0 = arith.constant 0 : index
    %0 = memref.load %arg2[%c0, %c0_0] : memref<1x1xf32, #tpu.memory_space<smem>>
    %c0_1 = arith.constant 0 : index
    %c0_2 = arith.constant 0 : index
    %1 = vector.load %arg3[%c0_1, %c0_2] : memref<8x128xbf16, #tpu.memory_space<vmem>>, vector<8x128xbf16>
    %c0_3 = arith.constant 0 : index
    %c0_4 = arith.constant 0 : index
    %2 = vector.load %arg4[%c0_3, %c0_4] : memref<128x8xbf16, #tpu.memory_space<vmem>>, vector<128x8xbf16>
    %cst = arith.constant dense<0.000000e+00> : vector<8x8xf32>
    %3 = tpu.matmul %1, %2, %cst {dimension_numbers = #tpu.dot_dimension_numbers<[1], [0], [0], [1], [0, 0, 1, 1], [], []>} : vector<8x128xbf16>, vector<128x8xbf16>, vector<8x8xf32> -> vector<8x8xf32>
    %4 = vector.broadcast %0 : f32 to vector<8x8xf32>
    %5 = arith.subf %3, %4 : vector<8x8xf32>
    %6 = math.exp %5 : vector<8x8xf32>
    %c0_i32 = arith.constant 0 : i32
    %7 = arith.cmpi eq, %arg1, %c0_i32 : i32
    %8 = arith.extui %7 : i1 to i32
    %c0_i32_5 = arith.constant 0 : i32
    %9 = arith.cmpi ne, %8, %c0_i32_5 : i32
    scf.if %9 {
      %cst_17 = arith.constant 0.000000e+00 : f32
      %23 = vector.broadcast %cst_17 : f32 to vector<8x1xf32>
      %c0_18 = arith.constant 0 : index
      %c0_19 = arith.constant 0 : index
      %24 = vector.load %arg5[%c0_18, %c0_19] : memref<8x1xf32, #tpu.memory_space<vmem>>, vector<8x1xf32>
      tpu.vector_store %arg5[%c0_18, %c0_19], %23 {strides = array<i32>} : memref<8x1xf32, #tpu.memory_space<vmem>>, vector<8x1xf32>,
    } else {
    }
    %c0_6 = arith.constant 0 : index
    %c0_7 = arith.constant 0 : index
    %10 = vector.load %arg5[%c0_6, %c0_7] : memref<8x1xf32, #tpu.memory_space<vmem>>, vector<8x1xf32>
    %cst_8 = arith.constant dense<0.000000e+00> : vector<8xf32>
    %11 = vector.multi_reduction <add>, %6, %cst_8 [1] : vector<8x8xf32> to vector<8xf32>
    %12 = vector.shape_cast %11 : vector<8xf32> to vector<8x1xf32>
    %13 = arith.addf %10, %12 : vector<8x1xf32>
    %c0_9 = arith.constant 0 : index
    %c0_10 = arith.constant 0 : index
    %14 = vector.load %arg5[%c0_9, %c0_10] : memref<8x1xf32, #tpu.memory_space<vmem>>, vector<8x1xf32>
    tpu.vector_store %arg5[%c0_9, %c0_10], %13 {strides = array<i32>} : memref<8x1xf32, #tpu.memory_space<vmem>>, vector<8x1xf32>,
    %cst_11 = arith.constant dense<0.000000e+00> : vector<8xf32>
    %15 = vector.multi_reduction <add>, %6, %cst_11 [0] : vector<8x8xf32> to vector<8xf32>
    %16 = vector.shape_cast %15 : vector<8xf32> to vector<1x8xf32>
    %c0_12 = arith.constant 0 : index
    %c0_13 = arith.constant 0 : index
    %c0_14 = arith.constant 0 : index
    %17 = vector.load %arg6[%c0_12, %c0_13, %c0_14] : memref<1x1x8xf32, #tpu.memory_space<vmem>>, vector<1x1x8xf32>
    %18 = vector.shape_cast %17 : vector<1x1x8xf32> to vector<1x8xf32>
    %19 = vector.shape_cast %16 : vector<1x8xf32> to vector<1x1x8xf32>
    tpu.vector_store %arg6[%c0_12, %c0_13, %c0_14], %19 {strides = array<i32>} : memref<1x1x8xf32, #tpu.memory_space<vmem>>, vector<1x1x8xf32>,
    %c0_i32_15 = arith.constant 0 : i32
    %20 = arith.cmpi eq, %arg1, %c0_i32_15 : i32
    %21 = arith.extui %20 : i1 to i32
    %c0_i32_16 = arith.constant 0 : i32
    %22 = arith.cmpi ne, %21, %c0_i32_16 : i32
    scf.if %22 {
      %c0_17 = arith.constant 0 : index
      %c0_18 = arith.constant 0 : index
      %23 = vector.load %arg5[%c0_17, %c0_18] : memref<8x1xf32, #tpu.memory_space<vmem>>, vector<8x1xf32>
      %24 = math.log %23 : vector<8x1xf32>
      %25 = vector.broadcast %0 : f32 to vector<8x1xf32>
      %26 = arith.addf %25, %24 : vector<8x1xf32>
      %c0_19 = arith.constant 0 : index
      %c0_20 = arith.constant 0 : index
      %27 = vector.load %arg5[%c0_19, %c0_20] : memref<8x1xf32, #tpu.memory_space<vmem>>, vector<8x1xf32>
      tpu.vector_store %arg5[%c0_19, %c0_20], %26 {strides = array<i32>} : memref<8x1xf32, #tpu.memory_space<vmem>>, vector<8x1xf32>,
    } else {
    }
    return
  }
  func.func @transform_0(%arg0: i32, %arg1: i32) -> (i32, i32) {
    %c0_i32 = arith.constant 0 : i32
    %c0_i32_0 = arith.constant 0 : i32
    %c0_i32_1 = arith.constant 0 : i32
    return %c0_i32, %c0_i32_0 : i32, i32
  }
  func.func @transform_1(%arg0: i32, %arg1: i32) -> (i32, i32) {
    %c0_i32 = arith.constant 0 : i32
    %c0_i32_0 = arith.constant 0 : i32
    return %arg0, %c0_i32 : i32, i32
  }
  func.func @transform_2(%arg0: i32, %arg1: i32) -> (i32, i32) {
    %c0_i32 = arith.constant 0 : i32
    %c0_i32_0 = arith.constant 0 : i32
    return %c0_i32, %arg1 : i32, i32
  }
  func.func @transform_3(%arg0: i32, %arg1: i32) -> (i32, i32) {
    %c0_i32 = arith.constant 0 : i32
    %c0_i32_0 = arith.constant 0 : i32
    return %arg0, %c0_i32 : i32, i32
  }
  func.func @transform_4(%arg0: i32, %arg1: i32) -> (i32, i32, i32) {
    %c0_i32 = arith.constant 0 : i32
    %c0_i32_0 = arith.constant 0 : i32
    return %arg0, %c0_i32, %arg1 : i32, i32, i32
  }
}

</mosaic_0001>

<llo_original>
// kernel: tpu_custom_call.1
$region0: #{tpu_custom_call.1}
  #allocation0 [shape = 'u32[]', space=smem, size = 0x4, offset = 0x4, fixed_abs, tag = 'smem constant byte address 0x4 - core index']
  #allocation1 [shape = 'u32[72,128]{1,0:T(1,128)}', space=vmem, size = 0x9000, scoped, tag = 'internal scratch']
  #allocation2 [shape = 'f32[1,1]{1,0:T(1,128)S(6)}', space=smem, size = 0x200, scoped, tag = 'scoped memory for tpu_custom_call.1']
  %s0 = inlined_call_operand.<no memory space> [shape: f32[1,1], index: 0, kind: input, shape index: {}]
  %s1 = inlined_call_operand.vmem [shape: bf16[8,128], index: 1, kind: input, shape index: {}]
  %s2 = inlined_call_operand.vmem [shape: bf16[128,8], index: 2, kind: input, shape index: {}]
  %s3 = inlined_call_operand.vmem [shape: f32[8,1], index: 3, kind: output, shape index: {0}]
  %s4 = inlined_call_operand.hbm [shape: f32[1,1,8], index: 4, kind: output, shape index: {1}]
  %5 = xla_tuple %s3, %s4
  %s6 = sld [smem:[#allocation0]]
  $region38: #{tpu_custom_call.1} parent=0
    _
  %s8 = ssub.s32 1, %s6
  %s9 = scalar_select 0, %s8, %s6
  %10 = sst [smem:[#allocation2]] %s0
  $region1: #{tpu_custom_call.1} parent=0
    #allocation3 [shape = 'u8[512]{0}', space=vmem, size = 0x400, scoped, tag = 'output window, operand 1, single buffered']
    #allocation4 [shape = 's32[1]{0}', space=sflag, size = 0x4, scoped, tag = 'scoped memory for tpu_custom_call.1']
    %11 = vsyncpa [#allocation4], 0
    // Predicated region
    $region2: #{tpu_custom_call.1} parent=1 // pred_check
      _
    $region3: #{tpu_custom_call.1} parent=1 // pred_check_branch
      %13 = sbr.rel (0) target = $region5
    $region4: #{tpu_custom_call.1} parent=1 // pred_region
      _
    $region5: #{tpu_custom_call.1} parent=1 // pred_fallthru
      _
    // Predicated region
    $region6: #{tpu_custom_call.1} parent=1 // pred_check
      _
    $region7: #{tpu_custom_call.1} parent=1 // pred_check_branch
      %15 = sbr.rel (0) target = $region9
    $region8: #{tpu_custom_call.1} parent=1 // pred_region
      _
    $region9: #{tpu_custom_call.1} parent=1 // pred_fallthru
      _
    // Predicated region
    $region10: #{tpu_custom_call.1} parent=1 // pred_check
      _
    $region11: #{tpu_custom_call.1} parent=1 // pred_check_branch
      %17 = sbr.rel (0) target = $region13
    $region12: #{tpu_custom_call.1} parent=1 // pred_region
      _
    $region13: #{tpu_custom_call.1} parent=1 // pred_fallthru
      _
    %s18 = sld [smem:[#allocation2]]
    %v19 = vld [vmem:[%s1] sm:$0xf]
    %v20 = vld [vmem:[%s2] sm:$0xf]
    %v21 = vld [vmem:[%s2 + $0x4] sm:$0xf]
    %v22 = vld [vmem:[%s2 + $0x8] sm:$0xf]
    %v23 = vld [vmem:[%s2 + $0xc] sm:$0xf]
    %v24 = vld [vmem:[%s2 + $0x10] sm:$0xf]
    %v25 = vld [vmem:[%s2 + $0x14] sm:$0xf]
    %v26 = vld [vmem:[%s2 + $0x18] sm:$0xf]
    %v27 = vld [vmem:[%s2 + $0x1c] sm:$0xf]
    %v28 = vld [vmem:[%s2 + $0x20] sm:$0xf]
    %v29 = vld [vmem:[%s2 + $0x24] sm:$0xf]
    %v30 = vld [vmem:[%s2 + $0x28] sm:$0xf]
    %v31 = vld [vmem:[%s2 + $0x2c] sm:$0xf]
    %v32 = vld [vmem:[%s2 + $0x30] sm:$0xf]
    %v33 = vld [vmem:[%s2 + $0x34] sm:$0xf]
    %v34 = vld [vmem:[%s2 + $0x38] sm:$0xf]
    %v35 = vld [vmem:[%s2 + $0x3c] sm:$0xf]
    %v52 = vunpack.c.l.b16 %v20
    %v53 = vunpack.c.l.b16 %v21
    %v54 = vunpack.c.l.b16 %v22
    %v55 = vunpack.c.l.b16 %v23
    %v56 = vunpack.c.l.b16 %v24
    %v57 = vunpack.c.l.b16 %v25
    %v58 = vunpack.c.l.b16 %v26
    %v59 = vunpack.c.l.b16 %v27
    %v60 = vunpack.c.l.b16 %v28
    %v61 = vunpack.c.l.b16 %v29
    %v62 = vunpack.c.l.b16 %v30
    %v63 = vunpack.c.l.b16 %v31
    %v64 = vunpack.c.l.b16 %v32
    %v65 = vunpack.c.l.b16 %v33
    %v66 = vunpack.c.l.b16 %v34
    %v67 = vunpack.c.l.b16 %v35
    %v68 = vpack.c.b16 %v53, %v52
    %v69 = vpack.c.b16 %v55, %v54
    %v70 = vpack.c.b16 %v57, %v56
    %v71 = vpack.c.b16 %v59, %v58
    %v72 = vpack.c.b16 %v61, %v60
    %v73 = vpack.c.b16 %v63, %v62
    %v74 = vpack.c.b16 %v65, %v64
    %v75 = vpack.c.b16 %v67, %v66
    %84 = vmatpush.bf16.msra.mxu0 %v75
    %85 = vmatpush.bf16.msra.mxu0 %v74
    %86 = vmatpush.bf16.msra.mxu0 %v73
    %87 = vmatpush.bf16.msra.mxu0 %v72
    %88 = vmatpush.bf16.msra.mxu0 %v71
    %89 = vmatpush.bf16.msra.mxu0 %v70
    %90 = vmatpush.bf16.msra.mxu0 %v69
    %91 = vmatpush.bf16.msra.mxu0 %v68
    %92 = vmatmul.bf16.gmra.mxu0 %v19
    %v93 = vpop.f32.mrf.mxu0
    %v94 = vadd.f32 0.0, %v93
    %v95 = vpop.f32.mrf.mxu0
    %96 = vdwg.mxu0
    %v97 = vstv %s18
    %v98 = vsub.f32 %v94, %v97
    %v99 = vmul.f32 %v98, 1.442695
    %v100 = vpow.pop %v99
    %p101 = scmp.eq.s32.totalorder 0, 0
    // Predicated region
    $region14: #{tpu_custom_call.1} parent=1 // pred_check
      %p102 = pneg %p101
    $region15: #{tpu_custom_call.1} parent=1 // pred_check_branch
      %104 = sbr.rel (%p102) target = $region17
    $region16: #{tpu_custom_call.1} parent=1 // pred_region
      %vm105 = vcmask 7168
      %106 = vst.msk [vmem:[%s3] sm:$0xff] %vm105, 0.0
    $region17: #{tpu_custom_call.1} parent=1 // pred_fallthru
      _
    %v107 = vld [vmem:[%s3] sm:$0xff]
    %vm108 = vcmask 64512
    %v109 = vsel %vm108, %v100, 0.0
    %110 = vadd.xlane.f32.xlu0 %v109
    %v111 = vpop.xlane.xlu0 %110
    %v112 = vadd.f32 %v107, %v111
    %vm113 = vcmask 7168
    %114 = vst.msk [vmem:[%s3] sm:$0xff] %vm113, %v112
    %v115 = vrot.slane %v109, 4
    %v116 = vadd.f32 %v109, %v115
    %v117 = vrot.slane %v116, 2
    %v118 = vadd.f32 %v116, %v117
    %v119 = vrot.slane %v118, 1
    %v120 = vadd.f32 %v118, %v119
    %vm121 = vcmask 57344
    %122 = vst.msk [vmem:[#allocation3] sm:$0x1] %vm121, %v120
    // Predicated region
    $region18: #{tpu_custom_call.1} parent=1 // pred_check
      %p123 = pneg %p101
    $region19: #{tpu_custom_call.1} parent=1 // pred_check_branch
      %125 = sbr.rel (%p123) target = $region21
    $region20: #{tpu_custom_call.1} parent=1 // pred_region
      %v126 = vld [vmem:[%s3] sm:$0xff]
      %v127 = vlog2.pop %v126
      %v128 = vmul.f32 %v127, 0.6931472
      %v129 = vadd.f32 %v97, %v128
      %130 = vst.msk [vmem:[%s3] sm:$0xff] %vm113, %v129
    $region21: #{tpu_custom_call.1} parent=1 // pred_fallthru
      _
    // Predicated region
    $region22: #{tpu_custom_call.1} parent=1 // pred_check
      _
    $region23: #{tpu_custom_call.1} parent=1 // pred_check_branch
      %132 = sbr.rel (0) target = $region25
    $region24: #{tpu_custom_call.1} parent=1 // pred_region
      _
    $region25: #{tpu_custom_call.1} parent=1 // pred_fallthru
      _
    // Predicated region
    $region26: #{tpu_custom_call.1} parent=1 // pred_check
      _
    $region27: #{tpu_custom_call.1} parent=1 // pred_check_branch
      %134 = sbr.rel (0) target = $region29
    $region28: #{tpu_custom_call.1} parent=1 // pred_region
      %136 = vsyncadd [#allocation4], 0
      %s138 = sshll.u32 [#allocation3], 4
      %s139 = int_to_ptr.vmem [resolvable:$true] %s138
      %s140 = sshll.u32 %s4, 4
      %s141 = int_to_ptr.hbm [resolvable:$true] %s140
      %143 = dma.vmem_to_hbm [thread:$0]  %s139, 16, %s141, [#allocation4]
    $region29: #{tpu_custom_call.1} parent=1 // pred_fallthru
      _
    // Predicated region
    $region30: #{tpu_custom_call.1} parent=1 // pred_check
      _
    $region31: #{tpu_custom_call.1} parent=1 // pred_check_branch
      %145 = sbr.rel (0) target = $region33
    $region32: #{tpu_custom_call.1} parent=1 // pred_region
      _
    $region33: #{tpu_custom_call.1} parent=1 // pred_fallthru
      _
    // Predicated region
    $region34: #{tpu_custom_call.1} parent=1 // pred_check
      _
    $region35: #{tpu_custom_call.1} parent=1 // pred_check_branch
      %147 = sbr.rel (0) target = $region37
    $region36: #{tpu_custom_call.1} parent=1 // pred_region
      %149 = dma.done [#allocation4], 16
    $region37: #{tpu_custom_call.1} parent=1 // pred_fallthru
      _
    %150 = vsyncpa [#allocation4], 1

</llo_original>
